<compile_context>
chip_gen: v7x
topology: tpu7x:2x2x1
jax: 0.10.0
libtpu: 0.0.40
codegen_flags: <defaults>
</compile_context>

<pallas_src>
import math

import jax
import jax.numpy as jnp
from jax.experimental import pallas as pl
from jax.experimental.pallas import tpu as pltpu


def make_pos_enc(d_model: int, max_seq_len: int = 6, dtype=jnp.float32) -> jnp.ndarray:
    """Sinusoidal positional-encoding buffer, identical to the PyTorch __init__.
    Shape (1, max_seq_len, d_model).  For bf16 models, build this once at init
    with dtype=jnp.bfloat16 so the forward pass never pays a per-call cast."""
    assert d_model % 2 == 0, "d_model must be even (same implicit assumption as the PyTorch module)"
    pos = jnp.arange(0, max_seq_len, dtype=jnp.float32)[:, None]                 # (S, 1)
    div_term = jnp.exp(
        jnp.arange(0, d_model, 2, dtype=jnp.float32) * (-math.log(10000.0) / d_model)
    )                                                                            # (D/2,)
    angles = pos * div_term                                                      # (S, D/2)
    pe = jnp.zeros((max_seq_len, d_model), dtype=jnp.float32)
    pe = pe.at[:, 0::2].set(jnp.sin(angles))
    pe = pe.at[:, 1::2].set(jnp.cos(angles))
    return pe[None, :, :].astype(dtype)                                          # (1, S, D)


def _pe_add_kernel(x_ref, pe_ref, o_ref):
    # Pure elementwise add; the PE block broadcasts over the (size-1) leading dim.
    o_ref[...] = x_ref[...] + pe_ref[...]


# ----------------------------- dispatch thresholds ---------------------------
_SMALL_BYTES = 512 * 1024              # whole problem VMEM-resident -> single block, no grid
_BLOCK_BYTES_TARGET = 4 * 1024 * 1024  # ~4 MiB per-array block for the tiled path
_VMEM_LIMIT_BYTES = 32 * 1024 * 1024   # <= physical VMEM on v5e/v6e (128 MiB) and v7x (64 MiB)


def _sublane(dtype) -> int:
    itemsize = jnp.dtype(dtype).itemsize
    return max(8, 32 // itemsize)      # 8 for f32, 16 for bf16, 32 for int8/fp8


def _single_block_forward(x: jnp.ndarray, pe: jnp.ndarray) -> jnp.ndarray:
    """Entire add as ONE pallas invocation (no grid-loop overhead)."""
    B, S, D = x.shape
    n = S * D
    if n % 128 == 0:
        # Lane-dense fold of each per-batch slab; preserves the PE broadcast.
        x_in = x.reshape(B, n // 128, 128)
        pe_in = pe.reshape(1, n // 128, 128)
    else:
        # Tiny / odd shapes: full-array block (no (8,128) constraint), masked
        # stores are irrelevant at this size.
        x_in, pe_in = x, pe
    out = pl.pallas_call(
        _pe_add_kernel,
        out_shape=jax.ShapeDtypeStruct(x_in.shape, x.dtype),
    )(x_in, pe_in)
    return out.reshape(B, S, D)


def _tiled_forward(x: jnp.ndarray, pe: jnp.ndarray,
                   block_bytes: int = _BLOCK_BYTES_TARGET) -> jnp.ndarray:
    """Large-input path: lane-dense folding + PE read exactly once per row tile."""
    B, S, D = x.shape
    n = S * D
    itemsize = jnp.dtype(x.dtype).itemsize
    sub = _sublane(x.dtype)

    if n % 128 == 0:
        # Fold each per-batch slab (S, D) -> (n//128, 128): every store is a full
        # unmasked 128-lane vst; PE folds identically so the broadcast is preserved.
        rows, cols = n // 128, 128
    else:
        # TODO(synk): when D % 128 != 0 stores are lane-masked; padding D in the
        # wrapper would cost a full extra read+write of x, so we accept vst.msk here.
        rows, cols = S, D
    x3 = x.reshape(B, rows, cols)
    pe3 = pe.reshape(1, rows, cols)

    slab_bytes = rows * cols * itemsize
    out_shape = jax.ShapeDtypeStruct((B, rows, cols), x.dtype)

    if slab_bytes <= block_bytes:
        # ---- Strategy A: batch-blocked. PE block index is constant across the
        # whole grid, so it is DMA'd once and every later re-read is skipped.
        b_blk = max(1, min(B, block_bytes // slab_bytes))
        out = pl.pallas_call(
            _pe_add_kernel,
            out_shape=out_shape,
            grid=(pl.cdiv(B, b_blk),),
            in_specs=[
                pl.BlockSpec((b_blk, rows, cols), lambda i: (i, 0, 0)),
                pl.BlockSpec((1, rows, cols), lambda i: (0, 0, 0)),   # PE: fetched once
            ],
            out_specs=pl.BlockSpec((b_blk, rows, cols), lambda i: (i, 0, 0)),
            compiler_params=pltpu.CompilerParams(
                dimension_semantics=("parallel",),
                vmem_limit_bytes=_VMEM_LIMIT_BYTES,
            ),
        )(x3, pe3)
    else:
        # ---- Strategy B: row-tiled. Grid = (row_tiles, B): batch is the INNER
        # sequential axis and the PE block index only depends on the row tile,
        # so the PE DMA is issued once per row tile, not once per (row, batch).
        cap = max(sub, block_bytes // (cols * itemsize))
        row_tile = min(rows, cap)
        if rows >= sub:
            row_tile = max(sub, (row_tile // sub) * sub)  # keep (8,128) tiling legal
        out = pl.pallas_call(
            _pe_add_kernel,
            out_shape=out_shape,
            grid=(pl.cdiv(rows, row_tile), B),
            in_specs=[
                pl.BlockSpec((1, row_tile, cols), lambda r, b: (b, r, 0)),
                pl.BlockSpec((1, row_tile, cols), lambda r, b: (0, r, 0)),  # const over b
            ],
            out_specs=pl.BlockSpec((1, row_tile, cols), lambda r, b: (b, r, 0)),
            compiler_params=pltpu.CompilerParams(
                dimension_semantics=("parallel", "arbitrary"),
                vmem_limit_bytes=_VMEM_LIMIT_BYTES,
            ),
        )(x3, pe3)
    return out.reshape(B, S, D)


def positional_encoding_forward(x: jnp.ndarray, pos_enc: jnp.ndarray) -> jnp.ndarray:
    """x: (B, S, D); pos_enc: (1, max_seq_len, D). Returns x + pos_enc[:, :S, :]."""
    B, S, D = x.shape
    pe = pos_enc[:, :S, :]                 # static slice: free view, no copy
    if pe.dtype != x.dtype:
        # Only pays a cast when the model dtype differs from the buffer; prefer
        # building the buffer in the model dtype at init (see make_pos_enc).
        pe = pe.astype(x.dtype)

    if x.size * jnp.dtype(x.dtype).itemsize <= _SMALL_BYTES:
        return _single_block_forward(x, pe)
    return _tiled_forward(x, pe)


if __name__ == "__main__":
    # --- toy shape matching the module defaults: d_model=32, max_seq_len=6 ---
    d_model, max_seq_len = 32, 6
    B, S = 2, 6
    key = jax.random.PRNGKey(0)
    k1, k2 = jax.random.split(key)

    x = jax.random.normal(k1, (B, S, d_model), dtype=jnp.float32)
    pos_enc = make_pos_enc(d_model, max_seq_len)

    out = jax.block_until_ready(positional_encoding_forward(x, pos_enc))
    ref = x + pos_enc[:, :S, :]
    assert out.shape == (B, S, d_model)
    assert jnp.allclose(out, ref, atol=1e-6), "single-block path mismatch vs reference"

    # --- larger shape: exercises the batch-blocked tiled path (strategy A) ---
    b2, s2, d2 = 4, 512, 256
    pos_enc2 = make_pos_enc(d2, max_seq_len=s2)
    x_big = jax.random.normal(k2, (b2, s2, d2), dtype=jnp.float32)
    out2 = jax.block_until_ready(positional_encoding_forward(x_big, pos_enc2))
    ref2 = x_big + pos_enc2[:, :s2, :]
    assert jnp.allclose(out2, ref2, atol=1e-6), "batch-blocked tiled path mismatch vs reference"

    # --- force the row-tiled path (strategy B) with a small block target so the
    #     multi-row-tile + inner-batch-loop code (PE DMA skip) is also exercised ---
    out3 = jax.block_until_ready(
        _tiled_forward(x_big, pos_enc2[:, :s2, :].astype(x_big.dtype), block_bytes=64 * 1024)
    )
    assert jnp.allclose(out3, ref2, atol=1e-6), "row-tiled path mismatch vs reference"

    print("KERNEL_OK")
</pallas_src>

<mosaic_0001>
module attributes {stable_mosaic.version = 11 : i64} {
  func.func @_pe_add_kernel(%arg0: memref<2x6x32xf32, #tpu.memory_space<vmem>>, %arg1: memref<1x6x32xf32, #tpu.memory_space<vmem>>, %arg2: memref<2x6x32xf32, #tpu.memory_space<vmem>>) attributes {dimension_semantics = [], scalar_prefetch = 0 : i64, scratch_operands = 0 : i64, tpu.core_type = #tpu.core_type<tc>} {
    %c0 = arith.constant 0 : index
    %c0_0 = arith.constant 0 : index
    %c0_1 = arith.constant 0 : index
    %0 = vector.load %arg0[%c0, %c0_0, %c0_1] : memref<2x6x32xf32, #tpu.memory_space<vmem>>, vector<2x6x32xf32>
    %c0_2 = arith.constant 0 : index
    %c0_3 = arith.constant 0 : index
    %c0_4 = arith.constant 0 : index
    %1 = vector.load %arg1[%c0_2, %c0_3, %c0_4] : memref<1x6x32xf32, #tpu.memory_space<vmem>>, vector<1x6x32xf32>
    %2 = vector.broadcast %1 : vector<1x6x32xf32> to vector<2x6x32xf32>
    %3 = arith.addf %0, %2 : vector<2x6x32xf32>
    %c0_5 = arith.constant 0 : index
    %c0_6 = arith.constant 0 : index
    %c0_7 = arith.constant 0 : index
    %4 = vector.load %arg2[%c0_5, %c0_6, %c0_7] : memref<2x6x32xf32, #tpu.memory_space<vmem>>, vector<2x6x32xf32>
    tpu.vector_store %arg2[%c0_5, %c0_6, %c0_7], %3 {strides = array<i32>} : memref<2x6x32xf32, #tpu.memory_space<vmem>>, vector<2x6x32xf32>,
    return
  }
}

</mosaic_0001>

<llo_original>
// kernel: tpu_custom_call.1
$region0: #{tpu_custom_call.1}
  #allocation0 [shape = 'u32[]', space=smem, size = 0x4, offset = 0x4, fixed_abs, tag = 'smem constant byte address 0x4 - core index']
  #allocation1 [shape = 'u32[144,128]{1,0:T(1,128)}', space=vmem, size = 0x12000, scoped, tag = 'internal scratch']
  %s0 = inlined_call_operand.vmem [shape: f32[2,6,32], index: 0, kind: input, shape index: {}]
  %s1 = inlined_call_operand.vmem [shape: f32[1,6,32], index: 1, kind: input, shape index: {}]
  %s2 = inlined_call_operand.vmem [shape: f32[2,6,32], index: 2, kind: output, shape index: {}]
  %s3 = sld [smem:[#allocation0]]
  $region18: #{tpu_custom_call.1} parent=0
    _
  %s5 = ssub.s32 1, %s3
  %s6 = scalar_select 0, %s5, %s3
  // Predicated region
  $region2: #{tpu_custom_call.1} parent=0 // pred_check
    _
  $region3: #{tpu_custom_call.1} parent=0 // pred_check_branch
    %8 = sbr.rel (0) target = $region5
  $region4: #{tpu_custom_call.1} parent=0 // pred_region
    _
  $region5: #{tpu_custom_call.1} parent=0 // pred_fallthru
    _
  // Predicated region
  $region6: #{tpu_custom_call.1} parent=0 // pred_check
    _
  $region7: #{tpu_custom_call.1} parent=0 // pred_check_branch
    %10 = sbr.rel (0) target = $region9
  $region8: #{tpu_custom_call.1} parent=0 // pred_region
    _
  $region9: #{tpu_custom_call.1} parent=0 // pred_fallthru
    _
  %v11 = vld [vmem:[%s0] sm:$0x3f]
  %v12 = vld [vmem:[%s0 + $0x8] sm:$0x3f]
  %v13 = vld [vmem:[%s1] sm:$0x3f]
  %v14 = vadd.f32 %v11, %v13
  %v15 = vadd.f32 %v12, %v13
  %vm16 = vcmask 259072
  %17 = vst.msk [vmem:[%s2] sm:$0x3f] %vm16, %v14
  %18 = vst.msk [vmem:[%s2 + $0x8] sm:$0x3f] %vm16, %v15
  // Predicated region
  $region10: #{tpu_custom_call.1} parent=0 // pred_check
    _
  $region11: #{tpu_custom_call.1} parent=0 // pred_check_branch
    %20 = sbr.rel (0) target = $region13
  $region12: #{tpu_custom_call.1} parent=0 // pred_region
    _
  $region13: #{tpu_custom_call.1} parent=0 // pred_fallthru
    _
  // Predicated region
  $region14: #{tpu_custom_call.1} parent=0 // pred_check
    _
  $region15: #{tpu_custom_call.1} parent=0 // pred_check_branch
    %22 = sbr.rel (0) target = $region17
  $region16: #{tpu_custom_call.1} parent=0 // pred_region
    _
  $region17: #{tpu_custom_call.1} parent=0 // pred_fallthru
    _

</llo_original>
